<compile_context>
chip_gen: v6e
topology: v6e:2x2x1
jax: 0.10.0
libtpu: 0.0.40
codegen_flags: <defaults>
</compile_context>

<pallas_src>
import functools

import jax
import jax.numpy as jnp
from jax.experimental import pallas as pl
from jax.experimental.pallas import tpu as pltpu

LANE = 128
SUBLANE = 8


def mlp_kernel(x_ref, w1_ref, b1_ref, w2_ref, b2_ref, w3_ref, b3_ref, o_ref):
    # x_ref / w*_ref are bf16 (MXU operands); biases + accumulation + ReLU are f32 (VPU).
    h = jnp.dot(x_ref[...], w1_ref[...], preferred_element_type=jnp.float32)
    h = jnp.maximum(h + b1_ref[...], 0.0)
    h = jnp.dot(h.astype(jnp.bfloat16), w2_ref[...], preferred_element_type=jnp.float32)
    h = jnp.maximum(h + b2_ref[...], 0.0)
    y = jnp.dot(h.astype(jnp.bfloat16), w3_ref[...], preferred_element_type=jnp.float32)
    o_ref[...] = (y + b3_ref[...]).astype(o_ref.dtype)


def _round_up(v, m):
    return ((v + m - 1) // m) * m


@functools.partial(jax.jit, static_argnames=("block_batch",))
def mlp_forward(x, w1, b1, w2, b2, w3, b3, *, block_batch=256):
    batch, in_f = x.shape
    h1 = w1.shape[1]
    h2 = w2.shape[1]
    out_f = w3.shape[1]

    # Batch tile: >=512 rows is ideal to amortize per-step overhead on real workloads;
    # clamp to the (sublane-rounded) batch when it is small.
    tb = _round_up(min(block_batch, batch), SUBLANE)
    padded_batch = _round_up(batch, tb)
    # Lane-dense output slab: pad out dim to a multiple of 128 -> unmasked stores.
    out_pad = _round_up(out_f, LANE)

    # Cast MXU operands to bf16 once outside the kernel (halves activation/weight DMA).
    xb = x.astype(jnp.bfloat16)
    if padded_batch != batch:
        xb = jnp.pad(xb, ((0, padded_batch - batch), (0, 0)))
    w1b = w1.astype(jnp.bfloat16)
    w2b = w2.astype(jnp.bfloat16)
    w3b = jnp.pad(w3, ((0, 0), (0, out_pad - out_f))).astype(jnp.bfloat16)
    b3p = jnp.pad(b3, ((0, 0), (0, out_pad - out_f)))

    grid = (padded_batch // tb,)
    const = lambda i: (0, 0)  # weights/biases resident in VMEM across all grid steps

    y = pl.pallas_call(
        mlp_kernel,
        out_shape=jax.ShapeDtypeStruct((padded_batch, out_pad), jnp.float32),
        grid=grid,
        in_specs=[
            pl.BlockSpec((tb, in_f), lambda i: (i, 0)),   # pipelined activation stream
            pl.BlockSpec((in_f, h1), const),
            pl.BlockSpec((1, h1), const),
            pl.BlockSpec((h1, h2), const),
            pl.BlockSpec((1, h2), const),
            pl.BlockSpec((h2, out_pad), const),
            pl.BlockSpec((1, out_pad), const),
        ],
        out_specs=pl.BlockSpec((tb, out_pad), lambda i: (i, 0)),
        compiler_params=pltpu.CompilerParams(
            # Batch steps are independent: shard across v7x's 2 TCs (no-op on v5e/v6e).
            dimension_semantics=("parallel",),
        ),
    )(xb, w1b, b1, w2b, b2, w3b, b3p)

    # Strip batch padding and the lane-padding of the output slab.
    return y[:batch, :out_f]


def init_linear_params(key, fan_in, fan_out):
    # PyTorch nn.Linear default init: U(-1/sqrt(fan_in), 1/sqrt(fan_in))
    kw, kb = jax.random.split(key)
    bound = 1.0 / jnp.sqrt(float(fan_in))
    # Stored as (in_features, out_features) so the kernel does x @ W + b.
    w = jax.random.uniform(kw, (fan_in, fan_out), jnp.float32, -bound, bound)
    b = jax.random.uniform(kb, (1, fan_out), jnp.float32, -bound, bound)
    return w, b


if __name__ == "__main__":
    inputs, h1, h2, outputs = 5, 8, 8, 1
    batch = 512  # exercises the batch grid (2 tiles of 256)

    root = jax.random.PRNGKey(0)
    kx, k1, k2, k3 = jax.random.split(root, 4)

    x = jax.random.normal(kx, (batch, inputs), jnp.float32)
    w1, b1 = init_linear_params(k1, inputs, h1)
    w2, b2 = init_linear_params(k2, h1, h2)
    w3, b3 = init_linear_params(k3, h2, outputs)

    y = mlp_forward(x, w1, b1, w2, b2, w3, b3, block_batch=256)
    y = jax.block_until_ready(y)
    assert y.shape == (batch, outputs)

    # Dtype-matched reference (bf16 MXU operands, f32 accumulation) -- tight check.
    def ref_bf16(x, w1, b1, w2, b2, w3, b3):
        h = jnp.dot(x.astype(jnp.bfloat16), w1.astype(jnp.bfloat16),
                    preferred_element_type=jnp.float32)
        h = jnp.maximum(h + b1, 0.0)
        h = jnp.dot(h.astype(jnp.bfloat16), w2.astype(jnp.bfloat16),
                    preferred_element_type=jnp.float32)
        h = jnp.maximum(h + b2, 0.0)
        yy = jnp.dot(h.astype(jnp.bfloat16), w3.astype(jnp.bfloat16),
                     preferred_element_type=jnp.float32)
        return yy + b3

    ref_m = ref_bf16(x, w1, b1, w2, b2, w3, b3)
    assert jnp.allclose(y, ref_m, atol=1e-4, rtol=1e-4)

    # Full-f32 reference -- loose check (bf16 operands lose ~3 decimal digits).
    ref_f32 = jnp.maximum(x @ w1 + b1, 0.0)
    ref_f32 = jnp.maximum(ref_f32 @ w2 + b2, 0.0)
    ref_f32 = ref_f32 @ w3 + b3
    assert jnp.allclose(y, ref_f32, atol=5e-2, rtol=5e-2)

    print("KERNEL_OK")
</pallas_src>

<mosaic_0001>
module attributes {stable_mosaic.version = 11 : i64} {
  func.func @mlp_kernel(%arg0: i32, %arg1: memref<256x5xbf16, #tpu.memory_space<vmem>>, %arg2: memref<5x8xbf16, #tpu.memory_space<vmem>>, %arg3: memref<1x8xf32, #tpu.memory_space<vmem>>, %arg4: memref<8x8xbf16, #tpu.memory_space<vmem>>, %arg5: memref<1x8xf32, #tpu.memory_space<vmem>>, %arg6: memref<8x128xbf16, #tpu.memory_space<vmem>>, %arg7: memref<1x128xf32, #tpu.memory_space<vmem>>, %arg8: memref<256x128xf32, #tpu.memory_space<vmem>>) attributes {dimension_semantics = [#tpu.dimension_semantics<parallel>], iteration_bounds = array<i64: 2>, scalar_prefetch = 0 : i64, scratch_operands = 0 : i64, tpu.core_type = #tpu.core_type<tc>, window_params = [{transform_indices = @transform_0, window_bounds = array<i64: 256, 5>}, {pipeline_mode = #tpu.pipeline_mode<synchronous>, transform_indices = @transform_1, window_bounds = array<i64: 5, 8>}, {pipeline_mode = #tpu.pipeline_mode<synchronous>, transform_indices = @transform_2, window_bounds = array<i64: 1, 8>}, {pipeline_mode = #tpu.pipeline_mode<synchronous>, transform_indices = @transform_3, window_bounds = array<i64: 8, 8>}, {pipeline_mode = #tpu.pipeline_mode<synchronous>, transform_indices = @transform_4, window_bounds = array<i64: 1, 8>}, {pipeline_mode = #tpu.pipeline_mode<synchronous>, transform_indices = @transform_5, window_bounds = array<i64: 8, 128>}, {pipeline_mode = #tpu.pipeline_mode<synchronous>, transform_indices = @transform_6, window_bounds = array<i64: 1, 128>}, {transform_indices = @transform_7, window_bounds = array<i64: 256, 128>}]} {
    %c0 = arith.constant 0 : index
    %c0_0 = arith.constant 0 : index
    %0 = vector.load %arg1[%c0, %c0_0] : memref<256x5xbf16, #tpu.memory_space<vmem>>, vector<256x5xbf16>
    %c0_1 = arith.constant 0 : index
    %c0_2 = arith.constant 0 : index
    %1 = vector.load %arg2[%c0_1, %c0_2] : memref<5x8xbf16, #tpu.memory_space<vmem>>, vector<5x8xbf16>
    %cst = arith.constant dense<0.000000e+00> : vector<256x8xf32>
    %2 = tpu.matmul %0, %1, %cst {dimension_numbers = #tpu.dot_dimension_numbers<[1], [0], [0], [1], [0, 0, 1, 1], [], []>} : vector<256x5xbf16>, vector<5x8xbf16>, vector<256x8xf32> -> vector<256x8xf32>
    %c0_3 = arith.constant 0 : index
    %c0_4 = arith.constant 0 : index
    %3 = vector.load %arg3[%c0_3, %c0_4] : memref<1x8xf32, #tpu.memory_space<vmem>>, vector<1x8xf32>
    %4 = vector.broadcast %3 : vector<1x8xf32> to vector<256x8xf32>
    %5 = arith.addf %2, %4 : vector<256x8xf32>
    %cst_5 = arith.constant 0.000000e+00 : f32
    %6 = vector.broadcast %cst_5 : f32 to vector<256x8xf32>
    %7 = arith.maximumf %5, %6 : vector<256x8xf32>
    %8 = arith.truncf %7 : vector<256x8xf32> to vector<256x8xbf16>
    %c0_6 = arith.constant 0 : index
    %c0_7 = arith.constant 0 : index
    %9 = vector.load %arg4[%c0_6, %c0_7] : memref<8x8xbf16, #tpu.memory_space<vmem>>, vector<8x8xbf16>
    %cst_8 = arith.constant dense<0.000000e+00> : vector<256x8xf32>
    %10 = tpu.matmul %8, %9, %cst_8 {dimension_numbers = #tpu.dot_dimension_numbers<[1], [0], [0], [1], [0, 0, 1, 1], [], []>} : vector<256x8xbf16>, vector<8x8xbf16>, vector<256x8xf32> -> vector<256x8xf32>
    %c0_9 = arith.constant 0 : index
    %c0_10 = arith.constant 0 : index
    %11 = vector.load %arg5[%c0_9, %c0_10] : memref<1x8xf32, #tpu.memory_space<vmem>>, vector<1x8xf32>
    %12 = vector.broadcast %11 : vector<1x8xf32> to vector<256x8xf32>
    %13 = arith.addf %10, %12 : vector<256x8xf32>
    %cst_11 = arith.constant 0.000000e+00 : f32
    %14 = vector.broadcast %cst_11 : f32 to vector<256x8xf32>
    %15 = arith.maximumf %13, %14 : vector<256x8xf32>
    %16 = arith.truncf %15 : vector<256x8xf32> to vector<256x8xbf16>
    %c0_12 = arith.constant 0 : index
    %c0_13 = arith.constant 0 : index
    %17 = vector.load %arg6[%c0_12, %c0_13] : memref<8x128xbf16, #tpu.memory_space<vmem>>, vector<8x128xbf16>
    %cst_14 = arith.constant dense<0.000000e+00> : vector<256x128xf32>
    %18 = tpu.matmul %16, %17, %cst_14 {dimension_numbers = #tpu.dot_dimension_numbers<[1], [0], [0], [1], [0, 0, 1, 1], [], []>} : vector<256x8xbf16>, vector<8x128xbf16>, vector<256x128xf32> -> vector<256x128xf32>
    %c0_15 = arith.constant 0 : index
    %c0_16 = arith.constant 0 : index
    %19 = vector.load %arg7[%c0_15, %c0_16] : memref<1x128xf32, #tpu.memory_space<vmem>>, vector<1x128xf32>
    %20 = vector.broadcast %19 : vector<1x128xf32> to vector<256x128xf32>
    %21 = arith.addf %18, %20 : vector<256x128xf32>
    %c0_17 = arith.constant 0 : index
    %c0_18 = arith.constant 0 : index
    %22 = vector.load %arg8[%c0_17, %c0_18] : memref<256x128xf32, #tpu.memory_space<vmem>>, vector<256x128xf32>
    tpu.vector_store %arg8[%c0_17, %c0_18], %21 {strides = array<i32>} : memref<256x128xf32, #tpu.memory_space<vmem>>, vector<256x128xf32>,
    return
  }
  func.func @transform_0(%arg0: i32) -> (i32, i32) {
    %c0_i32 = arith.constant 0 : i32
    %c0_i32_0 = arith.constant 0 : i32
    return %arg0, %c0_i32 : i32, i32
  }
  func.func @transform_1(%arg0: i32) -> (i32, i32) {
    %c0_i32 = arith.constant 0 : i32
    %c0_i32_0 = arith.constant 0 : i32
    %c0_i32_1 = arith.constant 0 : i32
    return %c0_i32, %c0_i32_0 : i32, i32
  }
  func.func @transform_2(%arg0: i32) -> (i32, i32) {
    %c0_i32 = arith.constant 0 : i32
    %c0_i32_0 = arith.constant 0 : i32
    %c0_i32_1 = arith.constant 0 : i32
    return %c0_i32, %c0_i32_0 : i32, i32
  }
  func.func @transform_3(%arg0: i32) -> (i32, i32) {
    %c0_i32 = arith.constant 0 : i32
    %c0_i32_0 = arith.constant 0 : i32
    %c0_i32_1 = arith.constant 0 : i32
    return %c0_i32, %c0_i32_0 : i32, i32
  }
  func.func @transform_4(%arg0: i32) -> (i32, i32) {
    %c0_i32 = arith.constant 0 : i32
    %c0_i32_0 = arith.constant 0 : i32
    %c0_i32_1 = arith.constant 0 : i32
    return %c0_i32, %c0_i32_0 : i32, i32
  }
  func.func @transform_5(%arg0: i32) -> (i32, i32) {
    %c0_i32 = arith.constant 0 : i32
    %c0_i32_0 = arith.constant 0 : i32
    %c0_i32_1 = arith.constant 0 : i32
    return %c0_i32, %c0_i32_0 : i32, i32
  }
  func.func @transform_6(%arg0: i32) -> (i32, i32) {
    %c0_i32 = arith.constant 0 : i32
    %c0_i32_0 = arith.constant 0 : i32
    %c0_i32_1 = arith.constant 0 : i32
    return %c0_i32, %c0_i32_0 : i32, i32
  }
  func.func @transform_7(%arg0: i32) -> (i32, i32) {
    %c0_i32 = arith.constant 0 : i32
    %c0_i32_0 = arith.constant 0 : i32
    return %arg0, %c0_i32 : i32, i32
  }
}

</mosaic_0001>

<llo_original>
// kernel: mlp_forward.1
$region0: #{mlp_forward.1}
  #allocation0 [shape = 'u32[]', space=smem, size = 0x4, offset = 0x4, fixed_abs, tag = 'smem constant byte address 0x4 - core index']
  #allocation1 [shape = 'u32[144,128]{1,0:T(1,128)}', space=vmem, size = 0x12000, scoped, tag = 'internal scratch']
  %s0 = inlined_call_operand.vmem [shape: bf16[512,5], index: 0, kind: input, shape index: {}]
  %s1 = inlined_call_operand.vmem [shape: bf16[5,8], index: 1, kind: input, shape index: {}]
  %s2 = inlined_call_operand.vmem [shape: f32[1,8], index: 2, kind: input, shape index: {}]
  %s3 = inlined_call_operand.vmem [shape: bf16[8,8], index: 3, kind: input, shape index: {}]
  %s4 = inlined_call_operand.vmem [shape: f32[1,8], index: 4, kind: input, shape index: {}]
  %s5 = inlined_call_operand.vmem [shape: bf16[8,128], index: 5, kind: input, shape index: {}]
  %s6 = inlined_call_operand.vmem [shape: f32[1,128], index: 6, kind: input, shape index: {}]
  %s7 = inlined_call_operand.vmem [shape: f32[512,128], index: 7, kind: output, shape index: {}]
  %s8 = sld [smem:[#allocation0]]
  $region61: #{mlp_forward.1} parent=0
    _
  %s10 = ssub.s32 1, %s8
  %s11 = scalar_select 0, %s10, %s8
  loop: start=0, step=1, limit=4
  $region2: #{mlp_forward.1} parent=0 // loop_pre_header
    _
  $region3: #{mlp_forward.1} parent=0 // loop_header
    %s13 = sphi 0, %s17
    %p14 = scmp.ge.s32.totalorder %s13, 4
    %s23 = sphi 0, %s25
    %s26 = sphi 0, %s23
    %s27 = sphi 0, %s26
    %s43 = sphi 0, %s27
    %s47 = sphi 0, %s47
    %s49 = sphi 0, %s47
    %s50 = sphi 0, %s49
    %s64 = sphi 0, %s50
    %s68 = sphi 0, %s68
    %s70 = sphi 0, %s68
    %s71 = sphi 0, %s70
    %s85 = sphi 0, %s71
    %s89 = sphi 0, %s89
    %s91 = sphi 0, %s89
    %s92 = sphi 0, %s91
    %s106 = sphi 0, %s92
    %s110 = sphi 0, %s110
    %s112 = sphi 0, %s110
    %s113 = sphi 0, %s112
    %s127 = sphi 0, %s113
    %s131 = sphi 0, %s131
    %s133 = sphi 0, %s131
    %s134 = sphi 0, %s133
    %s148 = sphi 0, %s134
    %s152 = sphi 0, %s152
    %s154 = sphi 0, %s152
    %s155 = sphi 0, %s154
    %s169 = sphi 0, %s155
    %s175 = sphi 0, %s177
    %s178 = sphi 0, %s175
    %s179 = sphi 0, %s178
    %s195 = sphi 0, %s179
  $region4: #{mlp_forward.1} parent=0 // loop_header_branch
    %16 = sbr.rel (%p14) target = $region8
  $region5: #{mlp_forward.1} parent=0 // loop_body
    %s18 = ssub.s32 %s13, 1
    %s19 = ssub.s32 %s13, 2
    %s20 = sadd.s32 %s13, 1
    %s21 = ssub.s32 %s13, %s20
    %p22 = scmp.eq.s32.totalorder %s21, 0
    %s24 = sadd.s32 %s23, 1
    %s25 = scalar_select %p22, %s23, %s24
    %p28 = pneg %p22
    %p29 = scmp.eq.s32.totalorder %s13, 1
    %p30 = por %p28, %p29
    %p31 = scmp.ne.s32.totalorder %s23, %s26
    %p32 = scmp.eq.s32.totalorder %s13, 0
    %p33 = por %p31, %p32
    %p34 = scmp.ne.s32.totalorder %s23, %s26
    %p35 = scmp.eq.s32.totalorder %s18, 1
    %p36 = por %p34, %p35
    %p37 = scmp.ne.s32.totalorder %s26, %s27
    %p38 = scmp.eq.s32.totalorder %s18, 0
    %p39 = por %p37, %p38
    %p40 = scmp.ne.s32.totalorder %s26, %s27
    %p41 = scmp.eq.s32.totalorder %s19, 1
    %p42 = por %p40, %p41
    %p44 = scmp.ne.s32.totalorder %s27, %s43
    %p45 = scmp.eq.s32.totalorder %s19, 0
    %p46 = por %p44, %p45
    %s48 = sadd.s32 %s47, 1
    %p51 = scmp.eq.s32.totalorder %s13, 1
    %p52 = scmp.ne.s32.totalorder %s47, %s49
    %p53 = scmp.eq.s32.totalorder %s13, 0
    %p54 = por %p52, %p53
    %p55 = scmp.ne.s32.totalorder %s47, %s49
    %p56 = scmp.eq.s32.totalorder %s18, 1
    %p57 = por %p55, %p56
    %p58 = scmp.ne.s32.totalorder %s49, %s50
    %p59 = scmp.eq.s32.totalorder %s18, 0
    %p60 = por %p58, %p59
    %p61 = scmp.ne.s32.totalorder %s49, %s50
    %p62 = scmp.eq.s32.totalorder %s19, 1
    %p63 = por %p61, %p62
    %p65 = scmp.ne.s32.totalorder %s50, %s64
    %p66 = scmp.eq.s32.totalorder %s19, 0
    %p67 = por %p65, %p66
    %s69 = sadd.s32 %s68, 1
    %p72 = scmp.eq.s32.totalorder %s13, 1
    %p73 = scmp.ne.s32.totalorder %s68, %s70
    %p74 = scmp.eq.s32.totalorder %s13, 0
    %p75 = por %p73, %p74
    %p76 = scmp.ne.s32.totalorder %s68, %s70
    %p77 = scmp.eq.s32.totalorder %s18, 1
    %p78 = por %p76, %p77
    %p79 = scmp.ne.s32.totalorder %s70, %s71
    %p80 = scmp.eq.s32.totalorder %s18, 0
    %p81 = por %p79, %p80
    %p82 = scmp.ne.s32.totalorder %s70, %s71
    %p83 = scmp.eq.s32.totalorder %s19, 1
    %p84 = por %p82, %p83
    %p86 = scmp.ne.s32.totalorder %s71, %s85
    %p87 = scmp.eq.s32.totalorder %s19, 0
    %p88 = por %p86, %p87
    %s90 = sadd.s32 %s89, 1
    %p93 = scmp.eq.s32.totalorder %s13, 1
    %p94 = scmp.ne.s32.totalorder %s89, %s91
    %p95 = scmp.eq.s32.totalorder %s13, 0
    %p96 = por %p94, %p95
    %p97 = scmp.ne.s32.totalorder %s89, %s91
    %p98 = scmp.eq.s32.totalorder %s18, 1
    %p99 = por %p97, %p98
    %p100 = scmp.ne.s32.totalorder %s91, %s92
    %p101 = scmp.eq.s32.totalorder %s18, 0
    %p102 = por %p100, %p101
    %p103 = scmp.ne.s32.totalorder %s91, %s92
    %p104 = scmp.eq.s32.totalorder %s19, 1
    %p105 = por %p103, %p104
    %p107 = scmp.ne.s32.totalorder %s92, %s106
    %p108 = scmp.eq.s32.totalorder %s19, 0
    %p109 = por %p107, %p108
    %s111 = sadd.s32 %s110, 1
    %p114 = scmp.eq.s32.totalorder %s13, 1
    %p115 = scmp.ne.s32.totalorder %s110, %s112
    %p116 = scmp.eq.s32.totalorder %s13, 0
    %p117 = por %p115, %p116
    %p118 = scmp.ne.s32.totalorder %s110, %s112
    %p119 = scmp.eq.s32.totalorder %s18, 1
    %p120 = por %p118, %p119
    %p121 = scmp.ne.s32.totalorder %s112, %s113
    %p122 = scmp.eq.s32.totalorder %s18, 0
    %p123 = por %p121, %p122
    %p124 = scmp.ne.s32.totalorder %s112, %s113
    %p125 = scmp.eq.s32.totalorder %s19, 1
    %p126 = por %p124, %p125
    %p128 = scmp.ne.s32.totalorder %s113, %s127
    %p129 = scmp.eq.s32.totalorder %s19, 0
    %p130 = por %p128, %p129
    %s132 = sadd.s32 %s131, 1
    %p135 = scmp.eq.s32.totalorder %s13, 1
    %p136 = scmp.ne.s32.totalorder %s131, %s133
    %p137 = scmp.eq.s32.totalorder %s13, 0
    %p138 = por %p136, %p137
    %p139 = scmp.ne.s32.totalorder %s131, %s133
    %p140 = scmp.eq.s32.totalorder %s18, 1
    %p141 = por %p139, %p140
    %p142 = scmp.ne.s32.totalorder %s133, %s134
    %p143 = scmp.eq.s32.totalorder %s18, 0
    %p144 = por %p142, %p143
    %p145 = scmp.ne.s32.totalorder %s133, %s134
    %p146 = scmp.eq.s32.totalorder %s19, 1
    %p147 = por %p145, %p146
    %p149 = scmp.ne.s32.totalorder %s134, %s148
    %p150 = scmp.eq.s32.totalorder %s19, 0
    %p151 = por %p149, %p150
    %s153 = sadd.s32 %s152, 1
    %p156 = scmp.eq.s32.totalorder %s13, 1
    %p157 = scmp.ne.s32.totalorder %s152, %s154
    %p158 = scmp.eq.s32.totalorder %s13, 0
    %p159 = por %p157, %p158
    %p160 = scmp.ne.s32.totalorder %s152, %s154
    %p161 = scmp.eq.s32.totalorder %s18, 1
    %p162 = por %p160, %p161
    %p163 = scmp.ne.s32.totalorder %s154, %s155
    %p164 = scmp.eq.s32.totalorder %s18, 0
    %p165 = por %p163, %p164
    %p166 = scmp.ne.s32.totalorder %s154, %s155
    %p167 = scmp.eq.s32.totalorder %s19, 1
    %p168 = por %p166, %p167
    %p170 = scmp.ne.s32.totalorder %s155, %s169
    %p171 = scmp.eq.s32.totalorder %s19, 0
    %p172 = por %p170, %p171
    %s173 = ssub.s32 %s13, %s20
    %p174 = scmp.eq.s32.totalorder %s173, 0
    %s176 = sadd.s32 %s175, 1
    %s177 = scalar_select %p174, %s175, %s176
    %p180 = pneg %p174
    %p181 = scmp.eq.s32.totalorder %s13, 1
    %p182 = por %p180, %p181
    %p183 = scmp.ne.s32.totalorder %s175, %s178
    %p184 = scmp.eq.s32.totalorder %s13, 0
    %p185 = por %p183, %p184
    %p186 = scmp.ne.s32.totalorder %s175, %s178
    %p187 = scmp.eq.s32.totalorder %s18, 1
    %p188 = por %p186, %p187
    %p189 = scmp.ne.s32.totalorder %s178, %s179
    %p190 = scmp.eq.s32.totalorder %s18, 0
    %p191 = por %p189, %p190
    %p192 = scmp.ne.s32.totalorder %s178, %s179
    %p193 = scmp.eq.s32.totalorder %s19, 1
    %p194 = por %p192, %p193
    %p196 = scmp.ne.s32.totalorder %s179, %s195
    %p197 = scmp.eq.s32.totalorder %s19, 0
    %p198 = por %p196, %p197
    %p199 = scmp.le.s32.totalorder 1, %s13
    %p200 = scmp.lt.s32.totalorder %s13, 3
    %p201 = pnand %p199, %p200
    %p202 = pneg %p201
    // Predicated region
    $region9: #{mlp_forward.1} parent=5 // pred_check
      _
    $region10: #{mlp_forward.1} parent=5 // pred_check_branch
      %204 = sbr.rel (%p201) target = $region12
    $region11: #{mlp_forward.1} parent=5 // pred_region
      %s205 = ssub.s32 %s13, 1
      // Predicated region
      $region13: #{mlp_forward.1} parent=11 // pred_check
        %p206 = pneg %p60
      $region14: #{mlp_forward.1} parent=11 // pred_check_branch
        %208 = sbr.rel (%p206) target = $region16
      $region15: #{mlp_forward.1} parent=11 // pred_region
        _
      $region16: #{mlp_forward.1} parent=11 // pred_fallthru
        _
      // Predicated region
      $region17: #{mlp_forward.1} parent=11 // pred_check
        %p209 = pneg %p81
      $region18: #{mlp_forward.1} parent=11 // pred_check_branch
        %211 = sbr.rel (%p209) target = $region20
      $region19: #{mlp_forward.1} parent=11 // pred_region
        _
      $region20: #{mlp_forward.1} parent=11 // pred_fallthru
        _
      // Predicated region
      $region21: #{mlp_forward.1} parent=11 // pred_check
        %p212 = pneg %p102
      $region22: #{mlp_forward.1} parent=11 // pred_check_branch
        %214 = sbr.rel (%p212) target = $region24
      $region23: #{mlp_forward.1} parent=11 // pred_region
        _
      $region24: #{mlp_forward.1} parent=11 // pred_fallthru
        _
      // Predicated region
      $region25: #{mlp_forward.1} parent=11 // pred_check
        %p215 = pneg %p123
      $region26: #{mlp_forward.1} parent=11 // pred_check_branch
        %217 = sbr.rel (%p215) target = $region28
      $region27: #{mlp_forward.1} parent=11 // pred_region
        _
      $region28: #{mlp_forward.1} parent=11 // pred_fallthru
        _
      // Predicated region
      $region29: #{mlp_forward.1} parent=11 // pred_check
        %p218 = pneg %p144
      $region30: #{mlp_forward.1} parent=11 // pred_check_branch
        %220 = sbr.rel (%p218) target = $region32
      $region31: #{mlp_forward.1} parent=11 // pred_region
        _
      $region32: #{mlp_forward.1} parent=11 // pred_fallthru
        _
      // Predicated region
      $region33: #{mlp_forward.1} parent=11 // pred_check
        %p221 = pneg %p165
      $region34: #{mlp_forward.1} parent=11 // pred_check_branch
        %223 = sbr.rel (%p221) target = $region36
      $region35: #{mlp_forward.1} parent=11 // pred_region
        _
      $region36: #{mlp_forward.1} parent=11 // pred_fallthru
        _
    $region12: #{mlp_forward.1} parent=5 // pred_fallthru
      _
    %p224 = scmp.lt.s32.totalorder %s13, 2
    // Predicated region
    $region37: #{mlp_forward.1} parent=5 // pred_check
      %p225 = pneg %p224
    $region38: #{mlp_forward.1} parent=5 // pred_check_branch
      %227 = sbr.rel (%p225) target = $region40
    $region39: #{mlp_forward.1} parent=5 // pred_region
      // Predicated region
      $region41: #{mlp_forward.1} parent=39 // pred_check
        %p228 = pneg %p33
      $region42: #{mlp_forward.1} parent=39 // pred_check_branch
        %230 = sbr.rel (%p228) target = $region44
      $region43: #{mlp_forward.1} parent=39 // pred_region
        %s231 = smul.u32 32, %s13
        %p232 = scmp.lt.s32.totalorder %s231, 63
        %s233 = scalar_select %p232, %s231, 63
        %s234 = smul.addr %s233, 4
        %s235 = scalar_lea.vmem %s0, %s234
        %s236 = smul.u32 32, %s13
      $region44: #{mlp_forward.1} parent=39 // pred_fallthru
        _
    $region40: #{mlp_forward.1} parent=5 // pred_fallthru
      _
    %p237 = scmp.le.s32.totalorder 1, %s13
    %p238 = scmp.lt.s32.totalorder %s13, 3
    %p239 = pnand %p237, %p238
    %p240 = pneg %p239
    // Predicated region
    $region45: #{mlp_forward.1} parent=5 // pred_check
      _
    $region46: #{mlp_forward.1} parent=5 // pred_check_branch
      %242 = sbr.rel (%p239) target = $region48
    $region47: #{mlp_forward.1} parent=5 // pred_region
      %s243 = ssub.s32 %s13, 1
      %s244 = smul.u32 32, %s18
      %p245 = scmp.lt.s32.totalorder %s244, 63
      %s246 = scalar_select %p245, %s244, 63
      %s247 = smul.addr %s246, 4
      %s248 = scalar_lea.vmem %s0, %s247
      %p249 = pneg %p39
      %p250 = pneg %p36
      %p251 = pneg %p60
      %p252 = pneg %p57
      %p253 = pneg %p81
      %p254 = pneg %p78
      %p255 = pneg %p102
      %p256 = pneg %p99
      %p257 = pneg %p123
      %p258 = pneg %p120
      %p259 = pneg %p144
      %p260 = pneg %p141
      %p261 = pneg %p165
      %p262 = pneg %p162
      %p263 = pneg %p191
      %p264 = pneg %p188
      %s265 = smul.u32 32, %s18
      %p266 = scmp.lt.s32.totalorder %s265, 63
      %s267 = scalar_select %p266, %s265, 63
      %s268 = smul.addr %s267, 8
      %s269 = scalar_lea.vmem %s7, %s268
      %s270 = smul.u32 32, %s18
      %p271 = scmp.lt.s32.totalorder %s270, 63
      %s272 = scalar_select %p271, %s270, 63
      %s273 = smul.addr %s272, 4
      %s274 = scalar_lea.vmem %s0, %s273
      %s275 = smul.u32 32, %s18
      %s276 = smul.u32 32, %s18
      %p277 = scmp.lt.s32.totalorder %s276, 63
      %s278 = scalar_select %p277, %s276, 63
      %s279 = smul.addr %s278, 8
      %s280 = scalar_lea.vmem %s7, %s279
      %s281 = smul.u32 32, %s18
      %v283 = vld [vmem:[%s274] sm:$0xf]
      %v284 = vld [vmem:[%s274 + $0x4] sm:$0xf]
      %v285 = vld [vmem:[%s274 + $0x8] sm:$0xf]
      %v286 = vld [vmem:[%s274 + $0xc] sm:$0xf]
      %v287 = vld [vmem:[%s274 + $0x10] sm:$0xf]
      %v288 = vld [vmem:[%s274 + $0x14] sm:$0xf]
      %v289 = vld [vmem:[%s274 + $0x18] sm:$0xf]
      %v290 = vld [vmem:[%s274 + $0x1c] sm:$0xf]
      %v291 = vld [vmem:[%s274 + $0x20] sm:$0xf]
      %v292 = vld [vmem:[%s274 + $0x24] sm:$0xf]
      %v293 = vld [vmem:[%s274 + $0x28] sm:$0xf]
      %v294 = vld [vmem:[%s274 + $0x2c] sm:$0xf]
      %v295 = vld [vmem:[%s274 + $0x30] sm:$0xf]
      %v296 = vld [vmem:[%s274 + $0x34] sm:$0xf]
      %v297 = vld [vmem:[%s274 + $0x38] sm:$0xf]
      %v298 = vld [vmem:[%s274 + $0x3c] sm:$0xf]
      %v299 = vld [vmem:[%s274 + $0x40] sm:$0xf]
      %v300 = vld [vmem:[%s274 + $0x44] sm:$0xf]
      %v301 = vld [vmem:[%s274 + $0x48] sm:$0xf]
      %v302 = vld [vmem:[%s274 + $0x4c] sm:$0xf]
      %v303 = vld [vmem:[%s274 + $0x50] sm:$0xf]
      %v304 = vld [vmem:[%s274 + $0x54] sm:$0xf]
      %v305 = vld [vmem:[%s274 + $0x58] sm:$0xf]
      %v306 = vld [vmem:[%s274 + $0x5c] sm:$0xf]
      %v307 = vld [vmem:[%s274 + $0x60] sm:$0xf]
      %v308 = vld [vmem:[%s274 + $0x64] sm:$0xf]
      %v309 = vld [vmem:[%s274 + $0x68] sm:$0xf]
      %v310 = vld [vmem:[%s274 + $0x6c] sm:$0xf]
      %v311 = vld [vmem:[%s274 + $0x70] sm:$0xf]
      %v312 = vld [vmem:[%s274 + $0x74] sm:$0xf]
      %v313 = vld [vmem:[%s274 + $0x78] sm:$0xf]
      %v314 = vld [vmem:[%s274 + $0x7c] sm:$0xf]
      %v315 = vld [vmem:[%s1] sm:$0x7]
      %v316 = vld [vmem:[%s2] sm:$0x1]
      %v318 = vlaneseq
      %v319 = vshrl.u32 %v318, 7
      %v320 = vsub.s32 0, %v319
      %v321 = vrot.slane %v316, %v320
      %v355 = vunpack.c.l.b16 %v283
      %v356 = vunpack.c.l.b16 %v284
      %v357 = vunpack.c.l.b16 %v285
      %v358 = vunpack.c.l.b16 %v286
      %v359 = vunpack.c.l.b16 %v287
      %v360 = vunpack.c.l.b16 %v288
      %v361 = vunpack.c.l.b16 %v289
      %v362 = vunpack.c.l.b16 %v290
      %v363 = vunpack.c.l.b16 %v291
      %v364 = vunpack.c.l.b16 %v292
      %v365 = vunpack.c.l.b16 %v293
      %v366 = vunpack.c.l.b16 %v294
      %v367 = vunpack.c.l.b16 %v295
      %v368 = vunpack.c.l.b16 %v296
      %v369 = vunpack.c.l.b16 %v297
      %v370 = vunpack.c.l.b16 %v298
      %v371 = vunpack.c.l.b16 %v299
      %v372 = vunpack.c.l.b16 %v300
      %v373 = vunpack.c.l.b16 %v301
      %v374 = vunpack.c.l.b16 %v302
      %v375 = vunpack.c.l.b16 %v303
      %v376 = vunpack.c.l.b16 %v304
      %v377 = vunpack.c.l.b16 %v305
      %v378 = vunpack.c.l.b16 %v306
      %v379 = vunpack.c.l.b16 %v307
      %v380 = vunpack.c.l.b16 %v308
      %v381 = vunpack.c.l.b16 %v309
      %v382 = vunpack.c.l.b16 %v310
      %v383 = vunpack.c.l.b16 %v311
      %v384 = vunpack.c.l.b16 %v312
      %v385 = vunpack.c.l.b16 %v313
      %v386 = vunpack.c.l.b16 %v314
      %v387 = vpack.c.b16 %v356, %v355
      %v388 = vpack.c.b16 %v358, %v357
      %v389 = vpack.c.b16 %v360, %v359
      %v390 = vpack.c.b16 %v362, %v361
      %v391 = vpack.c.b16 %v364, %v363
      %v392 = vpack.c.b16 %v366, %v365
      %v393 = vpack.c.b16 %v368, %v367
      %v394 = vpack.c.b16 %v370, %v369
      %v395 = vpack.c.b16 %v372, %v371
      %v396 = vpack.c.b16 %v374, %v373
      %v397 = vpack.c.b16 %v376, %v375
      %v398 = vpack.c.b16 %v378, %v377
      %v399 = vpack.c.b16 %v380, %v379
      %v400 = vpack.c.b16 %v382, %v381
      %v401 = vpack.c.b16 %v384, %v383
      %v402 = vpack.c.b16 %v386, %v385
      %vm403 = vcmask 39936
      %v405 = vsel %vm403, %v387, 0
      %v408 = vsel %vm403, %v388, 0
      %v411 = vsel %vm403, %v389, 0
      %v414 = vsel %vm403, %v390, 0
      %v417 = vsel %vm403, %v391, 0
      %v420 = vsel %vm403, %v392, 0
      %v423 = vsel %vm403, %v393, 0
      %v426 = vsel %vm403, %v394, 0
      %v429 = vsel %vm403, %v395, 0
      %v432 = vsel %vm403, %v396, 0
      %v435 = vsel %vm403, %v397, 0
      %v438 = vsel %vm403, %v398, 0
      %v441 = vsel %vm403, %v399, 0
      %v444 = vsel %vm403, %v400, 0
      %v447 = vsel %vm403, %v401, 0
      %v450 = vsel %vm403, %v402, 0
      %vm452 = vcmask 1041408
      %vm453 = vcmask 1042432
      %v454 = vsel %vm452, 4294967295, 65535
      %v455 = vsel %vm453, %v454, 0
      %v457 = vand.u32 %v315, %v455
      %459 = vmatprep.subr.bf16.mxu0 0
      %460 = vmatpush1.bf16.msra.mxu0 0
      %461 = vmatprep.subr.bf16.mxu0 0
      %462 = vmatpush1.bf16.msra.mxu0 0
      %463 = vmatprep.subr.bf16.mxu0 0
      %464 = vmatpush1.bf16.msra.mxu0 0
      %465 = vmatprep.subr.bf16.mxu0 0
      %466 = vmatpush1.bf16.msra.mxu0 0
      %467 = vmatprep.subr.bf16.mxu0 0
      %468 = vmatpush1.bf16.msra.mxu0 0
      %469 = vmatprep.subr.bf16.mxu0 0
      %470 = vmatpush1.bf16.msra.mxu0 0
      %471 = vmatprep.subr.bf16.mxu0 0
      %472 = vmatpush1.bf16.msra.mxu0 0
      %473 = vmatprep.subr.bf16.mxu0 0
      %474 = vmatpush1.bf16.msra.mxu0 %v457
      %475 = vmatprep.subr.bf16.mxu0 0
      %476 = vmatpush2.bf16.msra.mxu0 0
      %477 = vmatprep.subr.bf16.mxu0 0
      %478 = vmatpush2.bf16.msra.mxu0 0
      %479 = vmatprep.subr.bf16.mxu0 0
      %480 = vmatpush2.bf16.msra.mxu0 0
      %481 = vmatprep.subr.bf16.mxu0 0
      %482 = vmatpush2.bf16.msra.mxu0 0
      %483 = vmatprep.subr.bf16.mxu0 0
      %484 = vmatpush2.bf16.msra.mxu0 0
      %485 = vmatprep.subr.bf16.mxu0 0
      %486 = vmatpush2.bf16.msra.mxu0 0
      %487 = vmatprep.subr.bf16.mxu0 0
      %488 = vmatpush2.bf16.msra.mxu0 0
      %489 = vmatprep.subr.bf16.mxu0 0
      %490 = vmatpush2.bf16.msra.mxu0 0
      %491 = vmatprep.mubr.bf16.mxu0 0
      %492 = vmatmul.mubr.bf16.gmra.mxu0 %v405
      %v493 = vpop.f32.mrf.mxu0
      %v494 = vadd.f32 %v321, %v493
      %v495 = vpop.f32.mrf.mxu0
      %v496 = vpop.f32.mrf.mxu0
      %v497 = vadd.f32 %v321, %v496
      %v498 = vpop.f32.mrf.mxu0
      %499 = vmatprep.mubr.bf16.mxu0 0
      %500 = vmatmul.mubr.bf16.gmra.mxu0 %v408
      %v501 = vpop.f32.mrf.mxu0
      %v502 = vadd.f32 %v321, %v501
      %v503 = vpop.f32.mrf.mxu0
      %v504 = vpop.f32.mrf.mxu0
      %v505 = vadd.f32 %v321, %v504
      %v506 = vpop.f32.mrf.mxu0
      %507 = vmatprep.mubr.bf16.mxu0 0
      %508 = vmatmul.mubr.bf16.gmra.mxu0 %v411
      %v509 = vpop.f32.mrf.mxu0
      %v510 = vadd.f32 %v321, %v509
      %v511 = vpop.f32.mrf.mxu0
      %v512 = vpop.f32.mrf.mxu0
      %v513 = vadd.f32 %v321, %v512
      %v514 = vpop.f32.mrf.mxu0
      %515 = vmatprep.mubr.bf16.mxu0 0
      %516 = vmatmul.mubr.bf16.gmra.mxu0 %v414
      %v517 = vpop.f32.mrf.mxu0
      %v518 = vadd.f32 %v321, %v517
      %v519 = vpop.f32.mrf.mxu0
      %v520 = vpop.f32.mrf.mxu0
      %v521 = vadd.f32 %v321, %v520
      %v522 = vpop.f32.mrf.mxu0
      %523 = vmatprep.mubr.bf16.mxu0 0
      %524 = vmatmul.mubr.bf16.gmra.mxu0 %v417
      %v525 = vpop.f32.mrf.mxu0
      %v526 = vadd.f32 %v321, %v525
      %v527 = vpop.f32.mrf.mxu0
      %v528 = vpop.f32.mrf.mxu0
      %v529 = vadd.f32 %v321, %v528
      %v530 = vpop.f32.mrf.mxu0
      %531 = vmatprep.mubr.bf16.mxu0 0
      %532 = vmatmul.mubr.bf16.gmra.mxu0 %v420
      %v533 = vpop.f32.mrf.mxu0
      %v534 = vadd.f32 %v321, %v533
      %v535 = vpop.f32.mrf.mxu0
      %v536 = vpop.f32.mrf.mxu0
      %v537 = vadd.f32 %v321, %v536
      %v538 = vpop.f32.mrf.mxu0
      %539 = vmatprep.mubr.bf16.mxu0 0
      %540 = vmatmul.mubr.bf16.gmra.mxu0 %v423
      %v541 = vpop.f32.mrf.mxu0
      %v542 = vadd.f32 %v321, %v541
      %v543 = vpop.f32.mrf.mxu0
      %v544 = vpop.f32.mrf.mxu0
      %v545 = vadd.f32 %v321, %v544
      %v546 = vpop.f32.mrf.mxu0
      %547 = vmatprep.mubr.bf16.mxu0 0
      %548 = vmatmul.mubr.bf16.gmra.mxu0 %v426
      %v549 = vpop.f32.mrf.mxu0
      %v550 = vadd.f32 %v321, %v549
      %v551 = vpop.f32.mrf.mxu0
      %v552 = vpop.f32.mrf.mxu0
      %v553 = vadd.f32 %v321, %v552
      %v554 = vpop.f32.mrf.mxu0
      %555 = vmatprep.mubr.bf16.mxu0 0
      %556 = vmatmul.mubr.bf16.gmra.mxu0 %v429
      %v557 = vpop.f32.mrf.mxu0
      %v558 = vadd.f32 %v321, %v557
      %v559 = vpop.f32.mrf.mxu0
      %v560 = vpop.f32.mrf.mxu0
      %v561 = vadd.f32 %v321, %v560
      %v562 = vpop.f32.mrf.mxu0
      %563 = vmatprep.mubr.bf16.mxu0 0
      %564 = vmatmul.mubr.bf16.gmra.mxu0 %v432
      %v565 = vpop.f32.mrf.mxu0
      %v566 = vadd.f32 %v321, %v565
      %v567 = vpop.f32.mrf.mxu0
      %v568 = vpop.f32.mrf.mxu0
      %v569 = vadd.f32 %v321, %v568
      %v570 = vpop.f32.mrf.mxu0
      %571 = vmatprep.mubr.bf16.mxu0 0
      %572 = vmatmul.mubr.bf16.gmra.mxu0 %v435
      %v573 = vpop.f32.mrf.mxu0
      %v574 = vadd.f32 %v321, %v573
      %v575 = vpop.f32.mrf.mxu0
      %v576 = vpop.f32.mrf.mxu0
      %v577 = vadd.f32 %v321, %v576
      %v578 = vpop.f32.mrf.mxu0
      %579 = vmatprep.mubr.bf16.mxu0 0
      %580 = vmatmul.mubr.bf16.gmra.mxu0 %v438
      %v581 = vpop.f32.mrf.mxu0
      %v582 = vadd.f32 %v321, %v581
      %v583 = vpop.f32.mrf.mxu0
      %v584 = vpop.f32.mrf.mxu0
      %v585 = vadd.f32 %v321, %v584
      %v586 = vpop.f32.mrf.mxu0
      %587 = vmatprep.mubr.bf16.mxu0 0
      %588 = vmatmul.mubr.bf16.gmra.mxu0 %v441
      %v589 = vpop.f32.mrf.mxu0
      %v590 = vadd.f32 %v321, %v589
      %v591 = vpop.f32.mrf.mxu0
      %v592 = vpop.f32.mrf.mxu0
      %v593 = vadd.f32 %v321, %v592
      %v594 = vpop.f32.mrf.mxu0
      %595 = vmatprep.mubr.bf16.mxu0 0
      %596 = vmatmul.mubr.bf16.gmra.mxu0 %v444
      %v597 = vpop.f32.mrf.mxu0
      %v598 = vadd.f32 %v321, %v597
      %v599 = vpop.f32.mrf.mxu0
      %v600 = vpop.f32.mrf.mxu0
      %v601 = vadd.f32 %v321, %v600
      %v602 = vpop.f32.mrf.mxu0
      %603 = vmatprep.mubr.bf16.mxu0 0
      %604 = vmatmul.mubr.bf16.gmra.mxu0 %v447
      %v605 = vpop.f32.mrf.mxu0
      %v606 = vadd.f32 %v321, %v605
      %v607 = vpop.f32.mrf.mxu0
      %v608 = vpop.f32.mrf.mxu0
      %v609 = vadd.f32 %v321, %v608
      %v610 = vpop.f32.mrf.mxu0
      %611 = vmatprep.mubr.bf16.mxu0 0
      %612 = vmatmul.mubr.bf16.gmra.mxu0 %v450
      %v613 = vpop.f32.mrf.mxu0
      %v614 = vadd.f32 %v321, %v613
      %v615 = vpop.f32.mrf.mxu0
      %v616 = vpop.f32.mrf.mxu0
      %v617 = vadd.f32 %v321, %v616
      %v618 = vpop.f32.mrf.mxu0
      %619 = vdwg.mxu0
      %v620 = vmax.f32 %v494, 0.0
      %v621 = vmax.f32 %v497, 0.0
      %v622 = vmax.f32 %v502, 0.0
      %v623 = vmax.f32 %v505, 0.0
      %v624 = vmax.f32 %v510, 0.0
      %v625 = vmax.f32 %v513, 0.0
      %v626 = vmax.f32 %v518, 0.0
      %v627 = vmax.f32 %v521, 0.0
      %v628 = vmax.f32 %v526, 0.0
      %v629 = vmax.f32 %v529, 0.0
      %v630 = vmax.f32 %v534, 0.0
      %v631 = vmax.f32 %v537, 0.0
      %v632 = vmax.f32 %v542, 0.0
      %v633 = vmax.f32 %v545, 0.0
      %v634 = vmax.f32 %v550, 0.0
      %v635 = vmax.f32 %v553, 0.0
      %v636 = vmax.f32 %v558, 0.0
      %v637 = vmax.f32 %v561, 0.0
      %v638 = vmax.f32 %v566, 0.0
      %v639 = vmax.f32 %v569, 0.0
      %v640 = vmax.f32 %v574, 0.0
      %v641 = vmax.f32 %v577, 0.0
      %v642 = vmax.f32 %v582, 0.0
      %v643 = vmax.f32 %v585, 0.0
      %v644 = vmax.f32 %v590, 0.0
      %v645 = vmax.f32 %v593, 0.0
      %v646 = vmax.f32 %v598, 0.0
      %v647 = vmax.f32 %v601, 0.0
      %v648 = vmax.f32 %v606, 0.0
      %v649 = vmax.f32 %v609, 0.0
      %v650 = vmax.f32 %v614, 0.0
      %v651 = vmax.f32 %v617, 0.0
      %v652 = vpack.c.bf16 %v621, %v620
      %v653 = vpack.c.bf16 %v623, %v622
      %v654 = vpack.c.bf16 %v625, %v624
      %v655 = vpack.c.bf16 %v627, %v626
      %v656 = vpack.c.bf16 %v629, %v628
      %v657 = vpack.c.bf16 %v631, %v630
      %v658 = vpack.c.bf16 %v633, %v632
      %v659 = vpack.c.bf16 %v635, %v634
      %v660 = vpack.c.bf16 %v637, %v636
      %v661 = vpack.c.bf16 %v639, %v638
      %v662 = vpack.c.bf16 %v641, %v640
      %v663 = vpack.c.bf16 %v643, %v642
      %v664 = vpack.c.bf16 %v645, %v644
      %v665 = vpack.c.bf16 %v647, %v646
      %v666 = vpack.c.bf16 %v649, %v648
      %v667 = vpack.c.bf16 %v651, %v650
      %v668 = vld [vmem:[%s3] sm:$0xf]
      %v669 = vld [vmem:[%s4] sm:$0x1]
      %v671 = vlaneseq
      %v672 = vshrl.u32 %v671, 7
      %v673 = vsub.s32 0, %v672
      %v674 = vrot.slane %v669, %v673
      %vm676 = vcmask 64512
      %v678 = vsel %vm676, %v652, 0
      %v681 = vsel %vm676, %v653, 0
      %v684 = vsel %vm676, %v654, 0
      %v687 = vsel %vm676, %v655, 0
      %v690 = vsel %vm676, %v656, 0
      %v693 = vsel %vm676, %v657, 0
      %v696 = vsel %vm676, %v658, 0
      %v699 = vsel %vm676, %v659, 0
      %v702 = vsel %vm676, %v660, 0
      %v705 = vsel %vm676, %v661, 0
      %v708 = vsel %vm676, %v662, 0
      %v711 = vsel %vm676, %v663, 0
      %v714 = vsel %vm676, %v664, 0
      %v717 = vsel %vm676, %v665, 0
      %v720 = vsel %vm676, %v666, 0
      %v723 = vsel %vm676, %v667, 0
      %vm725 = vcmask 1043456
      %v727 = vsel %vm725, %v668, 0
      %729 = vmatprep.subr.bf16.mxu0 0
      %730 = vmatpush1.bf16.msra.mxu0 0
      %731 = vmatprep.subr.bf16.mxu0 0
      %732 = vmatpush1.bf16.msra.mxu0 0
      %733 = vmatprep.subr.bf16.mxu0 0
      %734 = vmatpush1.bf16.msra.mxu0 0
      %735 = vmatprep.subr.bf16.mxu0 0
      %736 = vmatpush1.bf16.msra.mxu0 0
      %737 = vmatprep.subr.bf16.mxu0 0
      %738 = vmatpush1.bf16.msra.mxu0 0
      %739 = vmatprep.subr.bf16.mxu0 0
      %740 = vmatpush1.bf16.msra.mxu0 0
      %741 = vmatprep.subr.bf16.mxu0 0
      %742 = vmatpush1.bf16.msra.mxu0 0
      %743 = vmatprep.subr.bf16.mxu0 0
      %744 = vmatpush1.bf16.msra.mxu0 %v727
      %745 = vmatprep.subr.bf16.mxu0 0
      %746 = vmatpush2.bf16.msra.mxu0 0
      %747 = vmatprep.subr.bf16.mxu0 0
      %748 = vmatpush2.bf16.msra.mxu0 0
      %749 = vmatprep.subr.bf16.mxu0 0
      %750 = vmatpush2.bf16.msra.mxu0 0
      %751 = vmatprep.subr.bf16.mxu0 0
      %752 = vmatpush2.bf16.msra.mxu0 0
      %753 = vmatprep.subr.bf16.mxu0 0
      %754 = vmatpush2.bf16.msra.mxu0 0
      %755 = vmatprep.subr.bf16.mxu0 0
      %756 = vmatpush2.bf16.msra.mxu0 0
      %757 = vmatprep.subr.bf16.mxu0 0
      %758 = vmatpush2.bf16.msra.mxu0 0
      %759 = vmatprep.subr.bf16.mxu0 0
      %760 = vmatpush2.bf16.msra.mxu0 0
      %761 = vmatprep.mubr.bf16.mxu0 0
      %762 = vmatmul.mubr.bf16.gmra.mxu0 %v678
      %v763 = vpop.f32.mrf.mxu0
      %v764 = vadd.f32 %v674, %v763
      %v765 = vpop.f32.mrf.mxu0
      %v766 = vpop.f32.mrf.mxu0
      %v767 = vadd.f32 %v674, %v766
      %v768 = vpop.f32.mrf.mxu0
      %769 = vmatprep.mubr.bf16.mxu0 0
      %770 = vmatmul.mubr.bf16.gmra.mxu0 %v681
      %v771 = vpop.f32.mrf.mxu0
      %v772 = vadd.f32 %v674, %v771
      %v773 = vpop.f32.mrf.mxu0
      %v774 = vpop.f32.mrf.mxu0
      %v775 = vadd.f32 %v674, %v774
      %v776 = vpop.f32.mrf.mxu0
      %777 = vmatprep.mubr.bf16.mxu0 0
      %778 = vmatmul.mubr.bf16.gmra.mxu0 %v684
      %v779 = vpop.f32.mrf.mxu0
      %v780 = vadd.f32 %v674, %v779
      %v781 = vpop.f32.mrf.mxu0
      %v782 = vpop.f32.mrf.mxu0
      %v783 = vadd.f32 %v674, %v782
      %v784 = vpop.f32.mrf.mxu0
      %785 = vmatprep.mubr.bf16.mxu0 0
      %786 = vmatmul.mubr.bf16.gmra.mxu0 %v687
      %v787 = vpop.f32.mrf.mxu0
      %v788 = vadd.f32 %v674, %v787
      %v789 = vpop.f32.mrf.mxu0
      %v790 = vpop.f32.mrf.mxu0
      %v791 = vadd.f32 %v674, %v790
      %v792 = vpop.f32.mrf.mxu0
      %793 = vmatprep.mubr.bf16.mxu0 0
      %794 = vmatmul.mubr.bf16.gmra.mxu0 %v690
      %v795 = vpop.f32.mrf.mxu0
      %v796 = vadd.f32 %v674, %v795
      %v797 = vpop.f32.mrf.mxu0
      %v798 = vpop.f32.mrf.mxu0
      %v799 = vadd.f32 %v674, %v798
      %v800 = vpop.f32.mrf.mxu0
      %801 = vmatprep.mubr.bf16.mxu0 0
      %802 = vmatmul.mubr.bf16.gmra.mxu0 %v693
      %v803 = vpop.f32.mrf.mxu0
      %v804 = vadd.f32 %v674, %v803
      %v805 = vpop.f32.mrf.mxu0
      %v806 = vpop.f32.mrf.mxu0
      %v807 = vadd.f32 %v674, %v806
      %v808 = vpop.f32.mrf.mxu0
      %809 = vmatprep.mubr.bf16.mxu0 0
      %810 = vmatmul.mubr.bf16.gmra.mxu0 %v696
      %v811 = vpop.f32.mrf.mxu0
      %v812 = vadd.f32 %v674, %v811
      %v813 = vpop.f32.mrf.mxu0
      %v814 = vpop.f32.mrf.mxu0
      %v815 = vadd.f32 %v674, %v814
      %v816 = vpop.f32.mrf.mxu0
      %817 = vmatprep.mubr.bf16.mxu0 0
      %818 = vmatmul.mubr.bf16.gmra.mxu0 %v699
      %v819 = vpop.f32.mrf.mxu0
      %v820 = vadd.f32 %v674, %v819
      %v821 = vpop.f32.mrf.mxu0
      %v822 = vpop.f32.mrf.mxu0
      %v823 = vadd.f32 %v674, %v822
      %v824 = vpop.f32.mrf.mxu0
      %825 = vmatprep.mubr.bf16.mxu0 0
      %826 = vmatmul.mubr.bf16.gmra.mxu0 %v702
      %v827 = vpop.f32.mrf.mxu0
      %v828 = vadd.f32 %v674, %v827
      %v829 = vpop.f32.mrf.mxu0
      %v830 = vpop.f32.mrf.mxu0
      %v831 = vadd.f32 %v674, %v830
      %v832 = vpop.f32.mrf.mxu0
      %833 = vmatprep.mubr.bf16.mxu0 0
      %834 = vmatmul.mubr.bf16.gmra.mxu0 %v705
      %v835 = vpop.f32.mrf.mxu0
      %v836 = vadd.f32 %v674, %v835
      %v837 = vpop.f32.mrf.mxu0
      %v838 = vpop.f32.mrf.mxu0
      %v839 = vadd.f32 %v674, %v838
      %v840 = vpop.f32.mrf.mxu0
      %841 = vmatprep.mubr.bf16.mxu0 0
      %842 = vmatmul.mubr.bf16.gmra.mxu0 %v708
      %v843 = vpop.f32.mrf.mxu0
      %v844 = vadd.f32 %v674, %v843
      %v845 = vpop.f32.mrf.mxu0
      %v846 = vpop.f32.mrf.mxu0
      %v847 = vadd.f32 %v674, %v846
      %v848 = vpop.f32.mrf.mxu0
      %849 = vmatprep.mubr.bf16.mxu0 0
      %850 = vmatmul.mubr.bf16.gmra.mxu0 %v711
      %v851 = vpop.f32.mrf.mxu0
      %v852 = vadd.f32 %v674, %v851
      %v853 = vpop.f32.mrf.mxu0
      %v854 = vpop.f32.mrf.mxu0
      %v855 = vadd.f32 %v674, %v854
      %v856 = vpop.f32.mrf.mxu0
      %857 = vmatprep.mubr.bf16.mxu0 0
      %858 = vmatmul.mubr.bf16.gmra.mxu0 %v714
      %v859 = vpop.f32.mrf.mxu0
      %v860 = vadd.f32 %v674, %v859
      %v861 = vpop.f32.mrf.mxu0
      %v862 = vpop.f32.mrf.mxu0
      %v863 = vadd.f32 %v674, %v862
      %v864 = vpop.f32.mrf.mxu0
      %865 = vmatprep.mubr.bf16.mxu0 0
      %866 = vmatmul.mubr.bf16.gmra.mxu0 %v717
      %v867 = vpop.f32.mrf.mxu0
      %v868 = vadd.f32 %v674, %v867
      %v869 = vpop.f32.mrf.mxu0
      %v870 = vpop.f32.mrf.mxu0
      %v871 = vadd.f32 %v674, %v870
      %v872 = vpop.f32.mrf.mxu0
      %873 = vmatprep.mubr.bf16.mxu0 0
      %874 = vmatmul.mubr.bf16.gmra.mxu0 %v720
      %v875 = vpop.f32.mrf.mxu0
      %v876 = vadd.f32 %v674, %v875
      %v877 = vpop.f32.mrf.mxu0
      %v878 = vpop.f32.mrf.mxu0
      %v879 = vadd.f32 %v674, %v878
      %v880 = vpop.f32.mrf.mxu0
      %881 = vmatprep.mubr.bf16.mxu0 0
      %882 = vmatmul.mubr.bf16.gmra.mxu0 %v723
      %v883 = vpop.f32.mrf.mxu0
      %v884 = vadd.f32 %v674, %v883
      %v885 = vpop.f32.mrf.mxu0
      %v886 = vpop.f32.mrf.mxu0
      %v887 = vadd.f32 %v674, %v886
      %v888 = vpop.f32.mrf.mxu0
      %889 = vdwg.mxu0
      %v890 = vmax.f32 %v764, 0.0
      %v891 = vmax.f32 %v767, 0.0
      %v892 = vmax.f32 %v772, 0.0
      %v893 = vmax.f32 %v775, 0.0
      %v894 = vmax.f32 %v780, 0.0
      %v895 = vmax.f32 %v783, 0.0
      %v896 = vmax.f32 %v788, 0.0
      %v897 = vmax.f32 %v791, 0.0
      %v898 = vmax.f32 %v796, 0.0
      %v899 = vmax.f32 %v799, 0.0
      %v900 = vmax.f32 %v804, 0.0
      %v901 = vmax.f32 %v807, 0.0
      %v902 = vmax.f32 %v812, 0.0
      %v903 = vmax.f32 %v815, 0.0
      %v904 = vmax.f32 %v820, 0.0
      %v905 = vmax.f32 %v823, 0.0
      %v906 = vmax.f32 %v828, 0.0
      %v907 = vmax.f32 %v831, 0.0
      %v908 = vmax.f32 %v836, 0.0
      %v909 = vmax.f32 %v839, 0.0
      %v910 = vmax.f32 %v844, 0.0
      %v911 = vmax.f32 %v847, 0.0
      %v912 = vmax.f32 %v852, 0.0
      %v913 = vmax.f32 %v855, 0.0
      %v914 = vmax.f32 %v860, 0.0
      %v915 = vmax.f32 %v863, 0.0
      %v916 = vmax.f32 %v868, 0.0
      %v917 = vmax.f32 %v871, 0.0
      %v918 = vmax.f32 %v876, 0.0
      %v919 = vmax.f32 %v879, 0.0
      %v920 = vmax.f32 %v884, 0.0
      %v921 = vmax.f32 %v887, 0.0
      %v922 = vpack.c.bf16 %v891, %v890
      %v923 = vpack.c.bf16 %v893, %v892
      %v924 = vpack.c.bf16 %v895, %v894
      %v925 = vpack.c.bf16 %v897, %v896
      %v926 = vpack.c.bf16 %v899, %v898
      %v927 = vpack.c.bf16 %v901, %v900
      %v928 = vpack.c.bf16 %v903, %v902
      %v929 = vpack.c.bf16 %v905, %v904
      %v930 = vpack.c.bf16 %v907, %v906
      %v931 = vpack.c.bf16 %v909, %v908
      %v932 = vpack.c.bf16 %v911, %v910
      %v933 = vpack.c.bf16 %v913, %v912
      %v934 = vpack.c.bf16 %v915, %v914
      %v935 = vpack.c.bf16 %v917, %v916
      %v936 = vpack.c.bf16 %v919, %v918
      %v937 = vpack.c.bf16 %v921, %v920
      %v938 = vld [vmem:[%s5] sm:$0xf]
      %v939 = vld [vmem:[%s6] sm:$0x1]
      %v941 = vlaneseq
      %v942 = vshrl.u32 %v941, 7
      %v943 = vsub.s32 0, %v942
      %v944 = vrot.slane %v939, %v943
      %v947 = vsel %vm676, %v922, 0
      %v950 = vsel %vm676, %v923, 0
      %v953 = vsel %vm676, %v924, 0
      %v956 = vsel %vm676, %v925, 0
      %v959 = vsel %vm676, %v926, 0
      %v962 = vsel %vm676, %v927, 0
      %v965 = vsel %vm676, %v928, 0
      %v968 = vsel %vm676, %v929, 0
      %v971 = vsel %vm676, %v930, 0
      %v974 = vsel %vm676, %v931, 0
      %v977 = vsel %vm676, %v932, 0
      %v980 = vsel %vm676, %v933, 0
      %v983 = vsel %vm676, %v934, 0
      %v986 = vsel %vm676, %v935, 0
      %v989 = vsel %vm676, %v936, 0
      %v992 = vsel %vm676, %v937, 0
      %v995 = vsel %vm725, %v938, 0
      %997 = vmatprep.subr.bf16.mxu0 0
      %998 = vmatpush1.bf16.msra.mxu0 0
      %999 = vmatprep.subr.bf16.mxu0 0
      %1000 = vmatpush1.bf16.msra.mxu0 0
      %1001 = vmatprep.subr.bf16.mxu0 0
      %1002 = vmatpush1.bf16.msra.mxu0 0
      %1003 = vmatprep.subr.bf16.mxu0 0
      %1004 = vmatpush1.bf16.msra.mxu0 0
      %1005 = vmatprep.subr.bf16.mxu0 0
      %1006 = vmatpush1.bf16.msra.mxu0 0
      %1007 = vmatprep.subr.bf16.mxu0 0
      %1008 = vmatpush1.bf16.msra.mxu0 0
      %1009 = vmatprep.subr.bf16.mxu0 0
      %1010 = vmatpush1.bf16.msra.mxu0 0
      %1011 = vmatprep.subr.bf16.mxu0 0
      %1012 = vmatpush1.bf16.msra.mxu0 %v995
      %1013 = vmatprep.subr.bf16.mxu0 0
      %1014 = vmatpush2.bf16.msra.mxu0 0
      %1015 = vmatprep.subr.bf16.mxu0 0
      %1016 = vmatpush2.bf16.msra.mxu0 0
      %1017 = vmatprep.subr.bf16.mxu0 0
      %1018 = vmatpush2.bf16.msra.mxu0 0
      %1019 = vmatprep.subr.bf16.mxu0 0
      %1020 = vmatpush2.bf16.msra.mxu0 0
      %1021 = vmatprep.subr.bf16.mxu0 0
      %1022 = vmatpush2.bf16.msra.mxu0 0
      %1023 = vmatprep.subr.bf16.mxu0 0
      %1024 = vmatpush2.bf16.msra.mxu0 0
      %1025 = vmatprep.subr.bf16.mxu0 0
      %1026 = vmatpush2.bf16.msra.mxu0 0
      %1027 = vmatprep.subr.bf16.mxu0 0
      %1028 = vmatpush2.bf16.msra.mxu0 0
      %1029 = vmatprep.mubr.bf16.mxu0 0
      %1030 = vmatmul.mubr.bf16.gmra.mxu0 %v947
      %v1031 = vpop.f32.mrf.mxu0
      %v1032 = vadd.f32 %v944, %v1031
      %v1033 = vpop.f32.mrf.mxu0
      %v1034 = vpop.f32.mrf.mxu0
      %v1035 = vadd.f32 %v944, %v1034
      %v1036 = vpop.f32.mrf.mxu0
      %1037 = vmatprep.mubr.bf16.mxu0 0
      %1038 = vmatmul.mubr.bf16.gmra.mxu0 %v950
      %v1039 = vpop.f32.mrf.mxu0
      %v1040 = vadd.f32 %v944, %v1039
      %v1041 = vpop.f32.mrf.mxu0
      %v1042 = vpop.f32.mrf.mxu0
      %v1043 = vadd.f32 %v944, %v1042
      %v1044 = vpop.f32.mrf.mxu0
      %1045 = vmatprep.mubr.bf16.mxu0 0
      %1046 = vmatmul.mubr.bf16.gmra.mxu0 %v953
      %v1047 = vpop.f32.mrf.mxu0
      %v1048 = vadd.f32 %v944, %v1047
      %v1049 = vpop.f32.mrf.mxu0
      %v1050 = vpop.f32.mrf.mxu0
      %v1051 = vadd.f32 %v944, %v1050
      %v1052 = vpop.f32.mrf.mxu0
      %1053 = vmatprep.mubr.bf16.mxu0 0
      %1054 = vmatmul.mubr.bf16.gmra.mxu0 %v956
      %v1055 = vpop.f32.mrf.mxu0
      %v1056 = vadd.f32 %v944, %v1055
      %v1057 = vpop.f32.mrf.mxu0
      %v1058 = vpop.f32.mrf.mxu0
      %v1059 = vadd.f32 %v944, %v1058
      %v1060 = vpop.f32.mrf.mxu0
      %1061 = vmatprep.mubr.bf16.mxu0 0
      %1062 = vmatmul.mubr.bf16.gmra.mxu0 %v959
      %v1063 = vpop.f32.mrf.mxu0
      %v1064 = vadd.f32 %v944, %v1063
      %v1065 = vpop.f32.mrf.mxu0
      %v1066 = vpop.f32.mrf.mxu0
      %v1067 = vadd.f32 %v944, %v1066
      %v1068 = vpop.f32.mrf.mxu0
      %1069 = vmatprep.mubr.bf16.mxu0 0
      %1070 = vmatmul.mubr.bf16.gmra.mxu0 %v962
      %v1071 = vpop.f32.mrf.mxu0
      %v1072 = vadd.f32 %v944, %v1071
      %v1073 = vpop.f32.mrf.mxu0
      %v1074 = vpop.f32.mrf.mxu0
      %v1075 = vadd.f32 %v944, %v1074
      %v1076 = vpop.f32.mrf.mxu0
      %1077 = vmatprep.mubr.bf16.mxu0 0
      %1078 = vmatmul.mubr.bf16.gmra.mxu0 %v965
      %v1079 = vpop.f32.mrf.mxu0
      %v1080 = vadd.f32 %v944, %v1079
      %v1081 = vpop.f32.mrf.mxu0
      %v1082 = vpop.f32.mrf.mxu0
      %v1083 = vadd.f32 %v944, %v1082
      %v1084 = vpop.f32.mrf.mxu0
      %1085 = vmatprep.mubr.bf16.mxu0 0
      %1086 = vmatmul.mubr.bf16.gmra.mxu0 %v968
      %v1087 = vpop.f32.mrf.mxu0
      %v1088 = vadd.f32 %v944, %v1087
      %v1089 = vpop.f32.mrf.mxu0
      %v1090 = vpop.f32.mrf.mxu0
      %v1091 = vadd.f32 %v944, %v1090
      %v1092 = vpop.f32.mrf.mxu0
      %1093 = vmatprep.mubr.bf16.mxu0 0
      %1094 = vmatmul.mubr.bf16.gmra.mxu0 %v971
      %v1095 = vpop.f32.mrf.mxu0
      %v1096 = vadd.f32 %v944, %v1095
      %v1097 = vpop.f32.mrf.mxu0
      %v1098 = vpop.f32.mrf.mxu0
      %v1099 = vadd.f32 %v944, %v1098
      %v1100 = vpop.f32.mrf.mxu0
      %1101 = vmatprep.mubr.bf16.mxu0 0
      %1102 = vmatmul.mubr.bf16.gmra.mxu0 %v974
      %v1103 = vpop.f32.mrf.mxu0
      %v1104 = vadd.f32 %v944, %v1103
      %v1105 = vpop.f32.mrf.mxu0
      %v1106 = vpop.f32.mrf.mxu0
      %v1107 = vadd.f32 %v944, %v1106
      %v1108 = vpop.f32.mrf.mxu0
      %1109 = vmatprep.mubr.bf16.mxu0 0
      %1110 = vmatmul.mubr.bf16.gmra.mxu0 %v977
      %v1111 = vpop.f32.mrf.mxu0
      %v1112 = vadd.f32 %v944, %v1111
      %v1113 = vpop.f32.mrf.mxu0
      %v1114 = vpop.f32.mrf.mxu0
      %v1115 = vadd.f32 %v944, %v1114
      %v1116 = vpop.f32.mrf.mxu0
      %1117 = vmatprep.mubr.bf16.mxu0 0
      %1118 = vmatmul.mubr.bf16.gmra.mxu0 %v980
      %v1119 = vpop.f32.mrf.mxu0
      %v1120 = vadd.f32 %v944, %v1119
      %v1121 = vpop.f32.mrf.mxu0
      %v1122 = vpop.f32.mrf.mxu0
      %v1123 = vadd.f32 %v944, %v1122
      %v1124 = vpop.f32.mrf.mxu0
      %1125 = vmatprep.mubr.bf16.mxu0 0
      %1126 = vmatmul.mubr.bf16.gmra.mxu0 %v983
      %v1127 = vpop.f32.mrf.mxu0
      %v1128 = vadd.f32 %v944, %v1127
      %v1129 = vpop.f32.mrf.mxu0
      %v1130 = vpop.f32.mrf.mxu0
      %v1131 = vadd.f32 %v944, %v1130
      %v1132 = vpop.f32.mrf.mxu0
      %1133 = vmatprep.mubr.bf16.mxu0 0
      %1134 = vmatmul.mubr.bf16.gmra.mxu0 %v986
      %v1135 = vpop.f32.mrf.mxu0
      %v1136 = vadd.f32 %v944, %v1135
      %v1137 = vpop.f32.mrf.mxu0
      %v1138 = vpop.f32.mrf.mxu0
      %v1139 = vadd.f32 %v944, %v1138
      %v1140 = vpop.f32.mrf.mxu0
      %1141 = vmatprep.mubr.bf16.mxu0 0
      %1142 = vmatmul.mubr.bf16.gmra.mxu0 %v989
      %v1143 = vpop.f32.mrf.mxu0
      %v1144 = vadd.f32 %v944, %v1143
      %v1145 = vpop.f32.mrf.mxu0
      %v1146 = vpop.f32.mrf.mxu0
      %v1147 = vadd.f32 %v944, %v1146
      %v1148 = vpop.f32.mrf.mxu0
      %1149 = vmatprep.mubr.bf16.mxu0 0
      %1150 = vmatmul.mubr.bf16.gmra.mxu0 %v992
      %v1151 = vpop.f32.mrf.mxu0
      %v1152 = vadd.f32 %v944, %v1151
      %v1153 = vpop.f32.mrf.mxu0
      %v1154 = vpop.f32.mrf.mxu0
      %v1155 = vadd.f32 %v944, %v1154
      %v1156 = vpop.f32.mrf.mxu0
      %1157 = vdwg.mxu0
      %1158 = vst [vmem:[%s280] sm:$0xff] %v1032
      %1159 = vst [vmem:[%s280 + $0x8] sm:$0xff] %v1035
      %1160 = vst [vmem:[%s280 + $0x10] sm:$0xff] %v1040
      %1161 = vst [vmem:[%s280 + $0x18] sm:$0xff] %v1043
      %1162 = vst [vmem:[%s280 + $0x20] sm:$0xff] %v1048
      %1163 = vst [vmem:[%s280 + $0x28] sm:$0xff] %v1051
      %1164 = vst [vmem:[%s280 + $0x30] sm:$0xff] %v1056
      %1165 = vst [vmem:[%s280 + $0x38] sm:$0xff] %v1059
      %1166 = vst [vmem:[%s280 + $0x40] sm:$0xff] %v1064
      %1167 = vst [vmem:[%s280 + $0x48] sm:$0xff] %v1067
      %1168 = vst [vmem:[%s280 + $0x50] sm:$0xff] %v1072
      %1169 = vst [vmem:[%s280 + $0x58] sm:$0xff] %v1075
      %1170 = vst [vmem:[%s280 + $0x60] sm:$0xff] %v1080
      %1171 = vst [vmem:[%s280 + $0x68] sm:$0xff] %v1083
      %1172 = vst [vmem:[%s280 + $0x70] sm:$0xff] %v1088
      %1173 = vst [vmem:[%s280 + $0x78] sm:$0xff] %v1091
      %1174 = vst [vmem:[%s280 + $0x80] sm:$0xff] %v1096
      %1175 = vst [vmem:[%s280 + $0x88] sm:$0xff] %v1099
      %1176 = vst [vmem:[%s280 + $0x90] sm:$0xff] %v1104
      %1177 = vst [vmem:[%s280 + $0x98] sm:$0xff] %v1107
      %1178 = vst [vmem:[%s280 + $0xa0] sm:$0xff] %v1112
      %1179 = vst [vmem:[%s280 + $0xa8] sm:$0xff] %v1115
      %1180 = vst [vmem:[%s280 + $0xb0] sm:$0xff] %v1120
      %1181 = vst [vmem:[%s280 + $0xb8] sm:$0xff] %v1123
      %1182 = vst [vmem:[%s280 + $0xc0] sm:$0xff] %v1128
      %1183 = vst [vmem:[%s280 + $0xc8] sm:$0xff] %v1131
      %1184 = vst [vmem:[%s280 + $0xd0] sm:$0xff] %v1136
      %1185 = vst [vmem:[%s280 + $0xd8] sm:$0xff] %v1139
      %1186 = vst [vmem:[%s280 + $0xe0] sm:$0xff] %v1144
      %1187 = vst [vmem:[%s280 + $0xe8] sm:$0xff] %v1147
      %1188 = vst [vmem:[%s280 + $0xf0] sm:$0xff] %v1152
      %1189 = vst [vmem:[%s280 + $0xf8] sm:$0xff] %v1155
      %s1190 = smul.u32 32, %s18
      %p1191 = scmp.lt.s32.totalorder %s1190, 63
      %s1192 = scalar_select %p1191, %s1190, 63
      %s1193 = smul.addr %s1192, 8
      %s1194 = scalar_lea.vmem %s7, %s1193
      // Predicated region
      $region49: #{mlp_forward.1} parent=47 // pred_check
        %p1195 = pneg %p188
      $region50: #{mlp_forward.1} parent=47 // pred_check_branch
        %1197 = sbr.rel (%p1195) target = $region52
      $region51: #{mlp_forward.1} parent=47 // pred_region
        %s1198 = smul.u32 32, %s18
      $region52: #{mlp_forward.1} parent=47 // pred_fallthru
        _
    $region48: #{mlp_forward.1} parent=5 // pred_fallthru
      _
    %p1199 = scmp.le.s32.totalorder 2, %s13
    // Predicated region
    $region53: #{mlp_forward.1} parent=5 // pred_check
      %p1200 = pneg %p1199
    $region54: #{mlp_forward.1} parent=5 // pred_check_branch
      %1202 = sbr.rel (%p1200) target = $region56
    $region55: #{mlp_forward.1} parent=5 // pred_region
      %s1203 = ssub.s32 %s13, 2
      // Predicated region
      $region57: #{mlp_forward.1} parent=55 // pred_check
        %p1204 = pneg %p194
      $region58: #{mlp_forward.1} parent=55 // pred_check_branch
        %1206 = sbr.rel (%p1204) target = $region60
      $region59: #{mlp_forward.1} parent=55 // pred_region
        %s1207 = smul.u32 32, %s19
        %p1208 = scmp.lt.s32.totalorder %s1207, 63
        %s1209 = scalar_select %p1208, %s1207, 63
        %s1210 = smul.addr %s1209, 8
        %s1211 = scalar_lea.vmem %s7, %s1210
      $region60: #{mlp_forward.1} parent=55 // pred_fallthru
        _
    $region56: #{mlp_forward.1} parent=5 // pred_fallthru
      _
  $region6: #{mlp_forward.1} parent=0 // loop_footer
    %s17 = sadd.s32 1, %s13
  $region7: #{mlp_forward.1} parent=0 // loop_footer_branch
    %12 = sbr.rel target = $region3
  $region8: #{mlp_forward.1} parent=0 // loop_exit
    _

</llo_original>
